<compile_context>
chip_gen: v7x
topology: tpu7x:2x2x1
jax: 0.10.0
libtpu: 0.0.40
codegen_flags: <defaults>
</compile_context>

<pallas_src>
import math

import jax
import jax.numpy as jnp
from jax.experimental import pallas as pl
from jax.experimental.pallas import tpu as pltpu


def _projection_head_kernel(x_ref, w1_ref, b1_ref, w2_ref, b2_ref,
                            gamma_ref, beta_ref, o_ref):
    # --- projection = Linear(embedding -> projection_dim) ---
    # Feed the MXU in the native input/weight dtype (bf16 stays bf16), f32 accumulate.
    projected = jnp.dot(x_ref[...], w1_ref[...],
                        preferred_element_type=jnp.float32)
    projected = projected + b1_ref[...].astype(jnp.float32)      # broadcast [1, P]

    # --- exact GELU (matches torch.nn.GELU default, erf formulation) ---
    # NOTE: tanh-approximate GELU would move most of this work VALU -> EUP;
    # exact erf is kept for bit-level parity with the PyTorch module.
    h = 0.5 * projected * (1.0 + jax.lax.erf(projected * (1.0 / math.sqrt(2.0))))

    # --- fc = Linear(projection_dim -> projection_dim) ---
    # Cast the activation down to the weight dtype so bf16 weights keep the
    # bf16 MXU path; with f32 weights this is a no-op.
    y = jnp.dot(h.astype(w2_ref.dtype), w2_ref[...],
                preferred_element_type=jnp.float32)
    y = y + b2_ref[...].astype(jnp.float32)

    # --- dropout: identity (inference / eval mode) ---
    # TODO(synk): training-mode dropout (stateful PRNG mask + 1/(1-p) scaling) not emitted.

    # --- residual add ---
    z = y + projected

    # --- LayerNorm over last axis, eps=1e-5, affine (mean-centered variance) ---
    p = z.shape[-1]
    inv_p = 1.0 / float(p)
    mean = jnp.sum(z, axis=-1, keepdims=True) * inv_p
    zc = z - mean
    var = jnp.sum(zc * zc, axis=-1, keepdims=True) * inv_p
    normed = zc * jax.lax.rsqrt(var + 1e-5)
    out = normed * gamma_ref[...].astype(jnp.float32) + beta_ref[...].astype(jnp.float32)

    o_ref[...] = out.astype(o_ref.dtype)


def projection_head_forward(x, w1, b1, w2, b2, gamma, beta, *, tile_b=2048):
    """x: [B, E]; w1: [E, P]; w2: [P, P]; b1/b2/gamma/beta: [1, P] -> [B, P]."""
    B, E = x.shape
    P = w1.shape[1]

    # ---- batch tile selection -------------------------------------------------
    # Cap: big tiles amortize the ~0.35us/step grid overhead and keep the HBM
    # DMA near roofline; 2048 rows is still only a few MiB here.
    tile_cap = max(8, min(int(tile_b), 2048))
    # Target >= 4 grid tiles (when B allows) so v7x's 2 TensorCores both get
    # work via the "parallel" grid axis and the double-buffer pipeline is primed.
    target = 8 * pl.cdiv(pl.cdiv(max(B, 1), 4), 8)
    tile_b = max(8, min(tile_cap, target))

    num_tiles = pl.cdiv(B, tile_b)
    # No wrapper-side padding: the last block may be ragged; Pallas masks the
    # partial output write and all kernel math is strictly row-wise.

    # ---- dtype-aware VMEM budget ----------------------------------------------
    act_bytes = jnp.dtype(x.dtype).itemsize
    w_bytes = jnp.dtype(w1.dtype).itemsize
    est_bytes = (2 * tile_b * E * act_bytes          # x (double-buffered)
                 + 2 * tile_b * P * act_bytes        # out (double-buffered)
                 + 6 * tile_b * P * 4                # f32 intermediates
                 + 2 * (E * P + P * P) * w_bytes     # resident weights (2 bufs)
                 + 2 * 4 * P * 4)                    # biases / LN params
    # Cap at 48 MiB so the same tiling is safe on v7x (64 MiB physical VMEM).
    vmem_limit = int(min(max(2 * est_bytes, 16 << 20), 48 << 20))

    resident2d = lambda r, c: pl.BlockSpec((r, c), lambda i: (0, 0))

    out = pl.pallas_call(
        _projection_head_kernel,
        out_shape=jax.ShapeDtypeStruct((B, P), x.dtype),
        grid=(num_tiles,),
        in_specs=[
            pl.BlockSpec((tile_b, E), lambda i: (i, 0)),   # x streams over the grid
            resident2d(E, P),                              # w1 resident
            resident2d(1, P),                              # b1 resident
            resident2d(P, P),                              # w2 resident
            resident2d(1, P),                              # b2 resident
            resident2d(1, P),                              # gamma resident
            resident2d(1, P),                              # beta resident
        ],
        out_specs=pl.BlockSpec((tile_b, P), lambda i: (i, 0)),
        compiler_params=pltpu.CompilerParams(
            dimension_semantics=("parallel",),
            vmem_limit_bytes=vmem_limit,
        ),
    )(x, w1, b1, w2, b2, gamma, beta)

    return out


def _reference_forward(x, w1, b1, w2, b2, gamma, beta):
    """Plain-JAX reference (for sanity check)."""
    x = x.astype(jnp.float32)
    projected = x @ w1.astype(jnp.float32) + b1
    h = 0.5 * projected * (1.0 + jax.lax.erf(projected / math.sqrt(2.0)))
    y = h @ w2.astype(jnp.float32) + b2
    z = y + projected
    mean = jnp.mean(z, axis=-1, keepdims=True)
    var = jnp.mean((z - mean) ** 2, axis=-1, keepdims=True)
    return (z - mean) * jax.lax.rsqrt(var + 1e-5) * gamma + beta


if __name__ == "__main__":
    # cfg_paras equivalent: image_embedding=32, projection_dim=128, dropout=0.1 (eval)
    embedding_dim = 32      # cfg_paras['image_embedding']
    projection_dim = 128    # cfg_paras['projection_dim']

    key = jax.random.PRNGKey(0)
    k_x, k_w1, k_b1, k_w2, k_b2, k_x2 = jax.random.split(key, 6)

    # Deterministic "Linear"-style init (uniform(-1/sqrt(fan_in), 1/sqrt(fan_in))).
    lim1 = 1.0 / math.sqrt(embedding_dim)
    w1 = jax.random.uniform(k_w1, (embedding_dim, projection_dim),
                            minval=-lim1, maxval=lim1, dtype=jnp.float32)
    b1 = jax.random.uniform(k_b1, (1, projection_dim),
                            minval=-lim1, maxval=lim1, dtype=jnp.float32)

    lim2 = 1.0 / math.sqrt(projection_dim)
    w2 = jax.random.uniform(k_w2, (projection_dim, projection_dim),
                            minval=-lim2, maxval=lim2, dtype=jnp.float32)
    b2 = jax.random.uniform(k_b2, (1, projection_dim),
                            minval=-lim2, maxval=lim2, dtype=jnp.float32)

    # LayerNorm affine params: gamma=1, beta=0 (PyTorch default init).
    gamma = jnp.ones((1, projection_dim), dtype=jnp.float32)
    beta = jnp.zeros((1, projection_dim), dtype=jnp.float32)

    # --- Case 1: small batch, single tile ---
    batch = 8
    x = jax.random.normal(k_x, (batch, embedding_dim), dtype=jnp.float32)
    out = jax.block_until_ready(projection_head_forward(x, w1, b1, w2, b2, gamma, beta))
    ref = _reference_forward(x, w1, b1, w2, b2, gamma, beta)
    assert out.shape == (batch, projection_dim)
    assert jnp.allclose(out, ref, atol=1e-4, rtol=1e-4), "mismatch vs reference (case 1)"

    # --- Case 2: uneven batch -> multi-tile grid with a ragged last block ---
    batch2 = 20
    x2 = jax.random.normal(k_x2, (batch2, embedding_dim), dtype=jnp.float32)
    out2 = jax.block_until_ready(
        projection_head_forward(x2, w1, b1, w2, b2, gamma, beta, tile_b=8))
    ref2 = _reference_forward(x2, w1, b1, w2, b2, gamma, beta)
    assert out2.shape == (batch2, projection_dim)
    assert jnp.allclose(out2, ref2, atol=1e-4, rtol=1e-4), "mismatch vs reference (case 2)"

    print("KERNEL_OK")
</pallas_src>

<mosaic_0001>
module attributes {stable_mosaic.version = 11 : i64} {
  func.func @_projection_head_kernel(%arg0: i32, %arg1: memref<8x32xf32, #tpu.memory_space<vmem>>, %arg2: memref<32x128xf32, #tpu.memory_space<vmem>>, %arg3: memref<1x128xf32, #tpu.memory_space<vmem>>, %arg4: memref<128x128xf32, #tpu.memory_space<vmem>>, %arg5: memref<1x128xf32, #tpu.memory_space<vmem>>, %arg6: memref<1x128xf32, #tpu.memory_space<vmem>>, %arg7: memref<1x128xf32, #tpu.memory_space<vmem>>, %arg8: memref<8x128xf32, #tpu.memory_space<vmem>>) attributes {dimension_semantics = [#tpu.dimension_semantics<parallel>], iteration_bounds = array<i64: 1>, scalar_prefetch = 0 : i64, scratch_operands = 0 : i64, tpu.core_type = #tpu.core_type<tc>, window_params = [{transform_indices = @transform_0, window_bounds = array<i64: 8, 32>}, {pipeline_mode = #tpu.pipeline_mode<synchronous>, transform_indices = @transform_1, window_bounds = array<i64: 32, 128>}, {pipeline_mode = #tpu.pipeline_mode<synchronous>, transform_indices = @transform_2, window_bounds = array<i64: 1, 128>}, {pipeline_mode = #tpu.pipeline_mode<synchronous>, transform_indices = @transform_3, window_bounds = array<i64: 128, 128>}, {pipeline_mode = #tpu.pipeline_mode<synchronous>, transform_indices = @transform_4, window_bounds = array<i64: 1, 128>}, {pipeline_mode = #tpu.pipeline_mode<synchronous>, transform_indices = @transform_5, window_bounds = array<i64: 1, 128>}, {pipeline_mode = #tpu.pipeline_mode<synchronous>, transform_indices = @transform_6, window_bounds = array<i64: 1, 128>}, {transform_indices = @transform_7, window_bounds = array<i64: 8, 128>}]} {
    %c0 = arith.constant 0 : index
    %c0_0 = arith.constant 0 : index
    %0 = vector.load %arg1[%c0, %c0_0] : memref<8x32xf32, #tpu.memory_space<vmem>>, vector<8x32xf32>
    %c0_1 = arith.constant 0 : index
    %c0_2 = arith.constant 0 : index
    %1 = vector.load %arg2[%c0_1, %c0_2] : memref<32x128xf32, #tpu.memory_space<vmem>>, vector<32x128xf32>
    %cst = arith.constant dense<0.000000e+00> : vector<8x128xf32>
    %2 = tpu.matmul %0, %1, %cst {dimension_numbers = #tpu.dot_dimension_numbers<[1], [0], [0], [1], [0, 0, 1, 1], [], []>} : vector<8x32xf32>, vector<32x128xf32>, vector<8x128xf32> -> vector<8x128xf32>
    %c0_3 = arith.constant 0 : index
    %c0_4 = arith.constant 0 : index
    %3 = vector.load %arg3[%c0_3, %c0_4] : memref<1x128xf32, #tpu.memory_space<vmem>>, vector<1x128xf32>
    %4 = vector.broadcast %3 : vector<1x128xf32> to vector<8x128xf32>
    %5 = arith.addf %2, %4 : vector<8x128xf32>
    %cst_5 = arith.constant 5.000000e-01 : f32
    %6 = vector.broadcast %cst_5 : f32 to vector<8x128xf32>
    %7 = arith.mulf %6, %5 : vector<8x128xf32>
    %cst_6 = arith.constant 0.707106769 : f32
    %8 = vector.broadcast %cst_6 : f32 to vector<8x128xf32>
    %9 = arith.mulf %5, %8 : vector<8x128xf32>
    %10 = math.erf %9 : vector<8x128xf32>
    %cst_7 = arith.constant 1.000000e+00 : f32
    %11 = vector.broadcast %cst_7 : f32 to vector<8x128xf32>
    %12 = arith.addf %11, %10 : vector<8x128xf32>
    %13 = arith.mulf %7, %12 : vector<8x128xf32>
    %c0_8 = arith.constant 0 : index
    %c0_9 = arith.constant 0 : index
    %14 = vector.load %arg4[%c0_8, %c0_9] : memref<128x128xf32, #tpu.memory_space<vmem>>, vector<128x128xf32>
    %cst_10 = arith.constant dense<0.000000e+00> : vector<8x128xf32>
    %15 = tpu.matmul %13, %14, %cst_10 {dimension_numbers = #tpu.dot_dimension_numbers<[1], [0], [0], [1], [0, 0, 1, 1], [], []>} : vector<8x128xf32>, vector<128x128xf32>, vector<8x128xf32> -> vector<8x128xf32>
    %c0_11 = arith.constant 0 : index
    %c0_12 = arith.constant 0 : index
    %16 = vector.load %arg5[%c0_11, %c0_12] : memref<1x128xf32, #tpu.memory_space<vmem>>, vector<1x128xf32>
    %17 = vector.broadcast %16 : vector<1x128xf32> to vector<8x128xf32>
    %18 = arith.addf %15, %17 : vector<8x128xf32>
    %19 = arith.addf %18, %5 : vector<8x128xf32>
    %cst_13 = arith.constant dense<0.000000e+00> : vector<8xf32>
    %20 = vector.multi_reduction <add>, %19, %cst_13 [1] : vector<8x128xf32> to vector<8xf32>
    %21 = vector.shape_cast %20 : vector<8xf32> to vector<8x1xf32>
    %cst_14 = arith.constant 7.812500e-03 : f32
    %22 = vector.broadcast %cst_14 : f32 to vector<8x1xf32>
    %23 = arith.mulf %21, %22 : vector<8x1xf32>
    %24 = vector.broadcast %23 : vector<8x1xf32> to vector<8x128xf32>
    %25 = arith.subf %19, %24 : vector<8x128xf32>
    %26 = arith.mulf %25, %25 : vector<8x128xf32>
    %cst_15 = arith.constant dense<0.000000e+00> : vector<8xf32>
    %27 = vector.multi_reduction <add>, %26, %cst_15 [1] : vector<8x128xf32> to vector<8xf32>
    %28 = vector.shape_cast %27 : vector<8xf32> to vector<8x1xf32>
    %cst_16 = arith.constant 7.812500e-03 : f32
    %29 = vector.broadcast %cst_16 : f32 to vector<8x1xf32>
    %30 = arith.mulf %28, %29 : vector<8x1xf32>
    %cst_17 = arith.constant 9.99999974E-6 : f32
    %31 = vector.broadcast %cst_17 : f32 to vector<8x1xf32>
    %32 = arith.addf %30, %31 : vector<8x1xf32>
    %33 = math.rsqrt %32 : vector<8x1xf32>
    %34 = vector.broadcast %33 : vector<8x1xf32> to vector<8x128xf32>
    %35 = arith.mulf %25, %34 : vector<8x128xf32>
    %c0_18 = arith.constant 0 : index
    %c0_19 = arith.constant 0 : index
    %36 = vector.load %arg6[%c0_18, %c0_19] : memref<1x128xf32, #tpu.memory_space<vmem>>, vector<1x128xf32>
    %37 = vector.broadcast %36 : vector<1x128xf32> to vector<8x128xf32>
    %38 = arith.mulf %35, %37 : vector<8x128xf32>
    %c0_20 = arith.constant 0 : index
    %c0_21 = arith.constant 0 : index
    %39 = vector.load %arg7[%c0_20, %c0_21] : memref<1x128xf32, #tpu.memory_space<vmem>>, vector<1x128xf32>
    %40 = vector.broadcast %39 : vector<1x128xf32> to vector<8x128xf32>
    %41 = arith.addf %38, %40 : vector<8x128xf32>
    %c0_22 = arith.constant 0 : index
    %c0_23 = arith.constant 0 : index
    %42 = vector.load %arg8[%c0_22, %c0_23] : memref<8x128xf32, #tpu.memory_space<vmem>>, vector<8x128xf32>
    tpu.vector_store %arg8[%c0_22, %c0_23], %41 {strides = array<i32>} : memref<8x128xf32, #tpu.memory_space<vmem>>, vector<8x128xf32>,
    return
  }
  func.func @transform_0(%arg0: i32) -> (i32, i32) {
    %c0_i32 = arith.constant 0 : i32
    %c0_i32_0 = arith.constant 0 : i32
    return %arg0, %c0_i32 : i32, i32
  }
  func.func @transform_1(%arg0: i32) -> (i32, i32) {
    %c0_i32 = arith.constant 0 : i32
    %c0_i32_0 = arith.constant 0 : i32
    %c0_i32_1 = arith.constant 0 : i32
    return %c0_i32, %c0_i32_0 : i32, i32
  }
  func.func @transform_2(%arg0: i32) -> (i32, i32) {
    %c0_i32 = arith.constant 0 : i32
    %c0_i32_0 = arith.constant 0 : i32
    %c0_i32_1 = arith.constant 0 : i32
    return %c0_i32, %c0_i32_0 : i32, i32
  }
  func.func @transform_3(%arg0: i32) -> (i32, i32) {
    %c0_i32 = arith.constant 0 : i32
    %c0_i32_0 = arith.constant 0 : i32
    %c0_i32_1 = arith.constant 0 : i32
    return %c0_i32, %c0_i32_0 : i32, i32
  }
  func.func @transform_4(%arg0: i32) -> (i32, i32) {
    %c0_i32 = arith.constant 0 : i32
    %c0_i32_0 = arith.constant 0 : i32
    %c0_i32_1 = arith.constant 0 : i32
    return %c0_i32, %c0_i32_0 : i32, i32
  }
  func.func @transform_5(%arg0: i32) -> (i32, i32) {
    %c0_i32 = arith.constant 0 : i32
    %c0_i32_0 = arith.constant 0 : i32
    %c0_i32_1 = arith.constant 0 : i32
    return %c0_i32, %c0_i32_0 : i32, i32
  }
  func.func @transform_6(%arg0: i32) -> (i32, i32) {
    %c0_i32 = arith.constant 0 : i32
    %c0_i32_0 = arith.constant 0 : i32
    %c0_i32_1 = arith.constant 0 : i32
    return %c0_i32, %c0_i32_0 : i32, i32
  }
  func.func @transform_7(%arg0: i32) -> (i32, i32) {
    %c0_i32 = arith.constant 0 : i32
    %c0_i32_0 = arith.constant 0 : i32
    return %arg0, %c0_i32 : i32, i32
  }
}

</mosaic_0001>

<llo_original>
// kernel: tpu_custom_call.1
$region0: #{tpu_custom_call.1}
  #allocation0 [shape = 'u32[]', space=smem, size = 0x4, offset = 0x4, fixed_abs, tag = 'smem constant byte address 0x4 - core index']
  #allocation1 [shape = 'u32[144,128]{1,0:T(1,128)}', space=vmem, size = 0x12000, scoped, tag = 'internal scratch']
  %s0 = inlined_call_operand.hbm [shape: f32[8,32], index: 0, kind: input, shape index: {}]
  %s1 = inlined_call_operand.hbm [shape: f32[32,128], index: 1, kind: input, shape index: {}]
  %s2 = inlined_call_operand.vmem [shape: f32[1,128], index: 2, kind: input, shape index: {}]
  %s3 = inlined_call_operand.hbm [shape: f32[128,128], index: 3, kind: input, shape index: {}]
  %s4 = inlined_call_operand.vmem [shape: f32[1,128], index: 4, kind: input, shape index: {}]
  %s5 = inlined_call_operand.vmem [shape: f32[1,128], index: 5, kind: input, shape index: {}]
  %s6 = inlined_call_operand.vmem [shape: f32[1,128], index: 6, kind: input, shape index: {}]
  %s7 = inlined_call_operand.hbm [shape: f32[8,128], index: 7, kind: output, shape index: {}]
  %s8 = sld [smem:[#allocation0]]
  $region50: #{tpu_custom_call.1} parent=0
    _
  %s10 = ssub.s32 1, %s8
  %s11 = scalar_select 0, %s10, %s8
  $region1: #{tpu_custom_call.1} parent=0
    #allocation2 [shape = 'u8[4096]{0}', space=vmem, size = 0x1000, scoped, tag = 'input window, operand 0, single buffered']
    #allocation3 [shape = 's32[1]{0}', space=sflag, size = 0x4, scoped, tag = 'scoped memory for tpu_custom_call.1']
    #allocation4 [shape = 's32[1]{0}', space=sflag, size = 0x4, scoped, tag = 'scoped memory for tpu_custom_call.1']
    #allocation5 [shape = 'u8[16384]{0}', space=vmem, size = 0x4000, scoped, tag = 'input window, operand 1, single buffered']
    #allocation6 [shape = 's32[1]{0}', space=sflag, size = 0x4, scoped, tag = 'scoped memory for tpu_custom_call.1']
    #allocation7 [shape = 'u8[65536]{0}', space=vmem, size = 0x10000, scoped, tag = 'input window, operand 3, single buffered']
    #allocation8 [shape = 'u8[4096]{0}', space=vmem, size = 0x1000, scoped, tag = 'output window, operand 0, single buffered']
    %12 = vsyncpa [#allocation3], 0
    %13 = vsyncpa [#allocation6], 0
    %14 = vsyncpa [#allocation4], 0
    // Predicated region
    $region2: #{tpu_custom_call.1} parent=1 // pred_check
      _
    $region3: #{tpu_custom_call.1} parent=1 // pred_check_branch
      %16 = sbr.rel (0) target = $region5
    $region4: #{tpu_custom_call.1} parent=1 // pred_region
      %s18 = ssub.s32 128, 128
      %19 = vsyncadd [#allocation3], %s18
      %s21 = sshll.u32 [#allocation2], 4
      %s22 = int_to_ptr.vmem [resolvable:$true] %s21
      %24 = dma.hbm_to_vmem [thread:$0]  %s0, 128, %s22, [#allocation3]
    $region5: #{tpu_custom_call.1} parent=1 // pred_fallthru
      _
    // Predicated region
    $region6: #{tpu_custom_call.1} parent=1 // pred_check
      _
    $region7: #{tpu_custom_call.1} parent=1 // pred_check_branch
      %26 = sbr.rel (0) target = $region9
    $region8: #{tpu_custom_call.1} parent=1 // pred_region
      %s28 = ssub.s32 512, 512
      %29 = vsyncadd [#allocation6], %s28
      %s30 = sshll.u32 [#allocation5], 4
      %s31 = int_to_ptr.vmem [resolvable:$true] %s30
      %36 = dma.hbm_to_vmem [thread:$0]  %s1, 512, %s31, [#allocation6], 128, 128, 8
    $region9: #{tpu_custom_call.1} parent=1 // pred_fallthru
      _
    // Predicated region
    $region10: #{tpu_custom_call.1} parent=1 // pred_check
      _
    $region11: #{tpu_custom_call.1} parent=1 // pred_check_branch
      %38 = sbr.rel (0) target = $region13
    $region12: #{tpu_custom_call.1} parent=1 // pred_region
      _
    $region13: #{tpu_custom_call.1} parent=1 // pred_fallthru
      _
    // Predicated region
    $region14: #{tpu_custom_call.1} parent=1 // pred_check
      _
    $region15: #{tpu_custom_call.1} parent=1 // pred_check_branch
      %40 = sbr.rel (0) target = $region17
    $region16: #{tpu_custom_call.1} parent=1 // pred_region
      %s42 = ssub.s32 2048, 2048
      %43 = vsyncadd [#allocation6], %s42
      %s44 = sshll.u32 [#allocation7], 4
      %s45 = int_to_ptr.vmem [resolvable:$true] %s44
      %50 = dma.hbm_to_vmem [thread:$0]  %s3, 2048, %s45, [#allocation6], 128, 128, 8
    $region17: #{tpu_custom_call.1} parent=1 // pred_fallthru
      _
    // Predicated region
    $region18: #{tpu_custom_call.1} parent=1 // pred_check
      _
    $region19: #{tpu_custom_call.1} parent=1 // pred_check_branch
      %52 = sbr.rel (0) target = $region21
    $region20: #{tpu_custom_call.1} parent=1 // pred_region
      _
    $region21: #{tpu_custom_call.1} parent=1 // pred_fallthru
      _
    // Predicated region
    $region22: #{tpu_custom_call.1} parent=1 // pred_check
      _
    $region23: #{tpu_custom_call.1} parent=1 // pred_check_branch
      %54 = sbr.rel (0) target = $region25
    $region24: #{tpu_custom_call.1} parent=1 // pred_region
      _
    $region25: #{tpu_custom_call.1} parent=1 // pred_fallthru
      _
    // Predicated region
    $region26: #{tpu_custom_call.1} parent=1 // pred_check
      _
    $region27: #{tpu_custom_call.1} parent=1 // pred_check_branch
      %56 = sbr.rel (0) target = $region29
    $region28: #{tpu_custom_call.1} parent=1 // pred_region
      _
    $region29: #{tpu_custom_call.1} parent=1 // pred_fallthru
      _
    // Predicated region
    $region30: #{tpu_custom_call.1} parent=1 // pred_check
      _
    $region31: #{tpu_custom_call.1} parent=1 // pred_check_branch
      %58 = sbr.rel (0) target = $region33
    $region32: #{tpu_custom_call.1} parent=1 // pred_region
      %59 = dma.done [#allocation3], 128
    $region33: #{tpu_custom_call.1} parent=1 // pred_fallthru
      _
    // Predicated region
    $region34: #{tpu_custom_call.1} parent=1 // pred_check
      _
    $region35: #{tpu_custom_call.1} parent=1 // pred_check_branch
      %61 = sbr.rel (0) target = $region37
    $region36: #{tpu_custom_call.1} parent=1 // pred_region
      %62 = dma.done [#allocation6], 512
    $region37: #{tpu_custom_call.1} parent=1 // pred_fallthru
      _
    // Predicated region
    $region38: #{tpu_custom_call.1} parent=1 // pred_check
      _
    $region39: #{tpu_custom_call.1} parent=1 // pred_check_branch
      %64 = sbr.rel (0) target = $region41
    $region40: #{tpu_custom_call.1} parent=1 // pred_region
      %65 = dma.done [#allocation6], 2048
    $region41: #{tpu_custom_call.1} parent=1 // pred_fallthru
      _
    %v66 = vld [vmem:[#allocation2] sm:$0xff]
    %v67 = vld [vmem:[#allocation5] sm:$0xff]
    %v68 = vld [vmem:[#allocation5 + $0x8] sm:$0xff]
    %v69 = vld [vmem:[#allocation5 + $0x10] sm:$0xff]
    %v70 = vld [vmem:[#allocation5 + $0x18] sm:$0xff]
    %v71 = vld [vmem:[%s2] sm:$0x1]
    %v73 = vlaneseq
    %v74 = vshrl.u32 %v73, 7
    %v75 = vsub.s32 0, %v74
    %v76 = vrot.slane %v71, %v75
    %vm78 = vcmask 261120
    %v80 = vsel %vm78, %v66, 0
    %82 = vmatprep.subr.mxu0 0.0
    %83 = vmatpush1.msra.mxu0 %v67
    %84 = vmatprep.subr.mxu0 0.0
    %85 = vmatpush1.msra.mxu0 %v68
    %86 = vmatprep.subr.mxu0 0.0
    %87 = vmatpush1.msra.mxu0 %v69
    %88 = vmatprep.subr.mxu0 0.0
    %89 = vmatpush1.msra.mxu0 %v70
    %90 = vmatprep.subr.mxu0 0.0
    %91 = vmatpush1.msra.mxu0 0.0
    %92 = vmatprep.subr.mxu0 0.0
    %93 = vmatpush1.msra.mxu0 0.0
    %94 = vmatprep.subr.mxu0 0.0
    %95 = vmatpush1.msra.mxu0 0.0
    %96 = vmatprep.subr.mxu0 0.0
    %97 = vmatpush1.msra.mxu0 0.0
    %98 = vmatprep.subr.mxu0 0.0
    %99 = vmatpush1.msra.mxu0 0.0
    %100 = vmatprep.subr.mxu0 0.0
    %101 = vmatpush1.msra.mxu0 0.0
    %102 = vmatprep.subr.mxu0 0.0
    %103 = vmatpush1.msra.mxu0 0.0
    %104 = vmatprep.subr.mxu0 0.0
    %105 = vmatpush1.msra.mxu0 0.0
    %106 = vmatprep.subr.mxu0 0.0
    %107 = vmatpush1.msra.mxu0 0.0
    %108 = vmatprep.subr.mxu0 0.0
    %109 = vmatpush1.msra.mxu0 0.0
    %110 = vmatprep.subr.mxu0 0.0
    %111 = vmatpush1.msra.mxu0 0.0
    %112 = vmatprep.subr.mxu0 0.0
    %113 = vmatpush1.msra.mxu0 0.0
    %114 = vmatprep.subr.mxu0 0.0
    %115 = vmatpush1.msra.mxu0 0.0
    %116 = vmatprep.subr.mxu0 0.0
    %117 = vmatpush1.msra.mxu0 0.0
    %118 = vmatprep.subr.mxu0 0.0
    %119 = vmatpush1.msra.mxu0 0.0
    %120 = vmatprep.subr.mxu0 0.0
    %121 = vmatpush1.msra.mxu0 0.0
    %122 = vmatprep.subr.mxu0 0.0
    %123 = vmatpush1.msra.mxu0 0.0
    %124 = vmatprep.subr.mxu0 0.0
    %125 = vmatpush1.msra.mxu0 0.0
    %126 = vmatprep.subr.mxu0 0.0
    %127 = vmatpush1.msra.mxu0 0.0
    %128 = vmatprep.subr.mxu0 0.0
    %129 = vmatpush1.msra.mxu0 0.0
    %130 = vmatprep.subr.mxu0 0.0
    %131 = vmatpush1.msra.mxu0 0.0
    %132 = vmatprep.subr.mxu0 0.0
    %133 = vmatpush1.msra.mxu0 0.0
    %134 = vmatprep.subr.mxu0 0.0
    %135 = vmatpush1.msra.mxu0 0.0
    %136 = vmatprep.subr.mxu0 0.0
    %137 = vmatpush1.msra.mxu0 0.0
    %138 = vmatprep.subr.mxu0 0.0
    %139 = vmatpush1.msra.mxu0 0.0
    %140 = vmatprep.subr.mxu0 0.0
    %141 = vmatpush1.msra.mxu0 0.0
    %142 = vmatprep.subr.mxu0 0.0
    %143 = vmatpush1.msra.mxu0 0.0
    %144 = vmatprep.subr.mxu0 0.0
    %145 = vmatpush1.msra.mxu0 0.0
    %146 = vmatprep.mubr.f32.mxu0 0.0
    %147 = vmatmul.mubr.f32.gmra.mrb[0].mxu0 %v80
    %v148 = vpop.f32.mrb[0].mxu0
    %v149 = vadd.f32 %v76, %v148
    %v150 = vpop.f32.mrb[0].mxu0
    %151 = vdwg.mxu0
    %v152 = vmul.f32 %v149, 0.5
    %v153 = vmul.f32 %v149, 0.70710677
    %v154 = verf.f32.pop %v153
    %v155 = vadd.f32 %v154, 1.0
    %v156 = vmul.f32 %v152, %v155
    %v157 = vld [vmem:[#allocation7] sm:$0xff]
    %v158 = vld [vmem:[#allocation7 + $0x8] sm:$0xff]
    %v159 = vld [vmem:[#allocation7 + $0x10] sm:$0xff]
    %v160 = vld [vmem:[#allocation7 + $0x18] sm:$0xff]
    %v161 = vld [vmem:[#allocation7 + $0x20] sm:$0xff]
    %v162 = vld [vmem:[#allocation7 + $0x28] sm:$0xff]
    %v163 = vld [vmem:[#allocation7 + $0x30] sm:$0xff]
    %v164 = vld [vmem:[#allocation7 + $0x38] sm:$0xff]
    %v165 = vld [vmem:[#allocation7 + $0x40] sm:$0xff]
    %v166 = vld [vmem:[#allocation7 + $0x48] sm:$0xff]
    %v167 = vld [vmem:[#allocation7 + $0x50] sm:$0xff]
    %v168 = vld [vmem:[#allocation7 + $0x58] sm:$0xff]
    %v169 = vld [vmem:[#allocation7 + $0x60] sm:$0xff]
    %v170 = vld [vmem:[#allocation7 + $0x68] sm:$0xff]
    %v171 = vld [vmem:[#allocation7 + $0x70] sm:$0xff]
    %v172 = vld [vmem:[#allocation7 + $0x78] sm:$0xff]
    %v173 = vld [vmem:[%s4] sm:$0x1]
    %v175 = vlaneseq
    %v176 = vshrl.u32 %v175, 7
    %v177 = vsub.s32 0, %v176
    %v178 = vrot.slane %v173, %v177
    %180 = vmatprep.subr.mxu0 0.0
    %181 = vmatpush1.msra.mxu0 %v157
    %182 = vmatprep.subr.mxu0 0.0
    %183 = vmatpush1.msra.mxu0 %v158
    %184 = vmatprep.subr.mxu0 0.0
    %185 = vmatpush1.msra.mxu0 %v159
    %186 = vmatprep.subr.mxu0 0.0
    %187 = vmatpush1.msra.mxu0 %v160
    %188 = vmatprep.subr.mxu0 0.0
    %189 = vmatpush1.msra.mxu0 %v161
    %190 = vmatprep.subr.mxu0 0.0
    %191 = vmatpush1.msra.mxu0 %v162
    %192 = vmatprep.subr.mxu0 0.0
    %193 = vmatpush1.msra.mxu0 %v163
    %194 = vmatprep.subr.mxu0 0.0
    %195 = vmatpush1.msra.mxu0 %v164
    %196 = vmatprep.subr.mxu0 0.0
    %197 = vmatpush1.msra.mxu0 %v165
    %198 = vmatprep.subr.mxu0 0.0
    %199 = vmatpush1.msra.mxu0 %v166
    %200 = vmatprep.subr.mxu0 0.0
    %201 = vmatpush1.msra.mxu0 %v167
    %202 = vmatprep.subr.mxu0 0.0
    %203 = vmatpush1.msra.mxu0 %v168
    %204 = vmatprep.subr.mxu0 0.0
    %205 = vmatpush1.msra.mxu0 %v169
    %206 = vmatprep.subr.mxu0 0.0
    %207 = vmatpush1.msra.mxu0 %v170
    %208 = vmatprep.subr.mxu0 0.0
    %209 = vmatpush1.msra.mxu0 %v171
    %210 = vmatprep.subr.mxu0 0.0
    %211 = vmatpush1.msra.mxu0 %v172
    %212 = vmatprep.subr.mxu0 0.0
    %213 = vmatpush1.msra.mxu0 0.0
    %214 = vmatprep.subr.mxu0 0.0
    %215 = vmatpush1.msra.mxu0 0.0
    %216 = vmatprep.subr.mxu0 0.0
    %217 = vmatpush1.msra.mxu0 0.0
    %218 = vmatprep.subr.mxu0 0.0
    %219 = vmatpush1.msra.mxu0 0.0
    %220 = vmatprep.subr.mxu0 0.0
    %221 = vmatpush1.msra.mxu0 0.0
    %222 = vmatprep.subr.mxu0 0.0
    %223 = vmatpush1.msra.mxu0 0.0
    %224 = vmatprep.subr.mxu0 0.0
    %225 = vmatpush1.msra.mxu0 0.0
    %226 = vmatprep.subr.mxu0 0.0
    %227 = vmatpush1.msra.mxu0 0.0
    %228 = vmatprep.subr.mxu0 0.0
    %229 = vmatpush1.msra.mxu0 0.0
    %230 = vmatprep.subr.mxu0 0.0
    %231 = vmatpush1.msra.mxu0 0.0
    %232 = vmatprep.subr.mxu0 0.0
    %233 = vmatpush1.msra.mxu0 0.0
    %234 = vmatprep.subr.mxu0 0.0
    %235 = vmatpush1.msra.mxu0 0.0
    %236 = vmatprep.subr.mxu0 0.0
    %237 = vmatpush1.msra.mxu0 0.0
    %238 = vmatprep.subr.mxu0 0.0
    %239 = vmatpush1.msra.mxu0 0.0
    %240 = vmatprep.subr.mxu0 0.0
    %241 = vmatpush1.msra.mxu0 0.0
    %242 = vmatprep.subr.mxu0 0.0
    %243 = vmatpush1.msra.mxu0 0.0
    %244 = vmatprep.mubr.f32.mxu0 0.0
    %245 = vmatmul.mubr.f32.gmra.mrb[0].mxu0 %v156
    %v246 = vpop.f32.mrb[0].mxu0
    %v247 = vadd.f32 %v178, %v246
    %v248 = vpop.f32.mrb[0].mxu0
    %249 = vdwg.mxu0
    %v250 = vadd.f32 %v247, %v149
    %251 = vadd.xlane.f32.xlu0 %v250
    %v252 = vpop.xlane.xlu0 %251
    %v253 = vmul.f32 %v252, 0.0078125
    %v254 = vsub.f32 %v250, %v253
    %v255 = vmul.f32 %v254, %v254
    %256 = vadd.xlane.f32.xlu0 %v255
    %v257 = vpop.xlane.xlu0 %256
    %v258 = vmul.f32 %v257, 0.0078125
    %v259 = vadd.f32 %v258, 1e-05
    %v260 = vrsqrt.pop %v259
    %v261 = vmul.f32 %v254, %v260
    %v262 = vld [vmem:[%s5] sm:$0x1]
    %v264 = vlaneseq
    %v265 = vshrl.u32 %v264, 7
    %v266 = vsub.s32 0, %v265
    %v267 = vrot.slane %v262, %v266
    %v269 = vmul.f32 %v261, %v267
    %v270 = vld [vmem:[%s6] sm:$0x1]
    %v272 = vlaneseq
    %v273 = vshrl.u32 %v272, 7
    %v274 = vsub.s32 0, %v273
    %v275 = vrot.slane %v270, %v274
    %v277 = vadd.f32 %v269, %v275
    %278 = vst [vmem:[#allocation8] sm:$0xff] %v277
    // Predicated region
    $region42: #{tpu_custom_call.1} parent=1 // pred_check
      _
    $region43: #{tpu_custom_call.1} parent=1 // pred_check_branch
      %280 = sbr.rel (0) target = $region45
    $region44: #{tpu_custom_call.1} parent=1 // pred_region
      %s282 = ssub.s32 128, 128
      %283 = vsyncadd [#allocation4], %s282
      %s285 = sshll.u32 [#allocation8], 4
      %s286 = int_to_ptr.vmem [resolvable:$true] %s285
      %288 = dma.vmem_to_hbm [thread:$0]  %s286, 128, %s7, [#allocation4]
    $region45: #{tpu_custom_call.1} parent=1 // pred_fallthru
      _
    // Predicated region
    $region46: #{tpu_custom_call.1} parent=1 // pred_check
      _
    $region47: #{tpu_custom_call.1} parent=1 // pred_check_branch
      %290 = sbr.rel (0) target = $region49
    $region48: #{tpu_custom_call.1} parent=1 // pred_region
      %291 = dma.done [#allocation4], 128
    $region49: #{tpu_custom_call.1} parent=1 // pred_fallthru
      _
    %292 = vsyncpa [#allocation3], 1
    %293 = vsyncpa [#allocation6], 1
    %294 = vsyncpa [#allocation4], 1

</llo_original>
